<compile_context>
chip_gen: v5e
topology: v5e:2x2
jax: 0.10.0
libtpu: 0.0.40
codegen_flags: <defaults>
</compile_context>

<pallas_src>
import functools

import jax
import jax.numpy as jnp
from jax.experimental import pallas as pl
from jax.experimental.pallas import tpu as pltpu


def _round_up(x: int, m: int) -> int:
    return (x + m - 1) // m * m


def _critic_kernel(s_ref, a_ref, w1s_ref, w1a_ref, b1_ref,
                   w2_ref, b2_ref, w3_ref, b3_ref, out_ref):
    cdt = w2_ref.dtype  # compute dtype fed to the MXU (f32 or bf16)

    # fc1: split matmul replaces concat([state, action]) @ W1.
    # Two MXU pushes into the same f32 accumulator; no cross-lane work.
    h1 = jnp.dot(s_ref[...], w1s_ref[...], preferred_element_type=jnp.float32)
    h1 = h1 + jnp.dot(a_ref[...], w1a_ref[...],
                      preferred_element_type=jnp.float32)
    h1 = jnp.maximum(h1 + b1_ref[...], 0.0)          # bias + ReLU in f32

    # fc2 + relu
    h2 = jnp.dot(h1.astype(cdt), w2_ref[...],
                 preferred_element_type=jnp.float32)
    h2 = jnp.maximum(h2 + b2_ref[...], 0.0)

    # fc3 (no activation); lane-padded output stays dense for unmasked stores.
    y = jnp.dot(h2.astype(cdt), w3_ref[...],
                preferred_element_type=jnp.float32)
    out_ref[...] = (y + b3_ref[...]).astype(out_ref.dtype)


@functools.partial(jax.jit, static_argnames=("compute_dtype", "tile_b"))
def critic_forward(state, action, params, *, compute_dtype=jnp.float32,
                   tile_b=256):
    """Fused Critic forward pass.

    state:  [B, state_dim]  float32
    action: [B, action_dim] float32
    returns [B, num_quantiles] float32
    """
    w1, b1, w2, b2, w3, b3 = params
    B, state_dim = state.shape
    action_dim = action.shape[1]
    H = w1.shape[1]                      # hidden width (128)
    nq = w3.shape[1]                     # num_quantiles

    # ---- batch tiling (sublane-aligned; clamp for tiny batches) ----
    sub = 16 if compute_dtype == jnp.bfloat16 else 8
    tb = min(int(tile_b), _round_up(B, sub))
    tb = _round_up(tb, sub)
    b_pad = _round_up(B, tb)

    # ---- lane-dense output padding (nq -> multiple of 128) ----
    nq_pad = _round_up(nq, 128)

    # ---- prepare operands (split W1, cast MXU operands, pad) ----
    cdt = compute_dtype
    s = jnp.pad(state, ((0, b_pad - B), (0, 0))).astype(cdt)
    a = jnp.pad(action, ((0, b_pad - B), (0, 0))).astype(cdt)
    w1s = w1[:state_dim].astype(cdt)
    w1a = w1[state_dim:].astype(cdt)
    w2c = w2.astype(cdt)
    w3c = jnp.pad(w3, ((0, 0), (0, nq_pad - nq))).astype(cdt)
    b3p = jnp.pad(b3, ((0, 0), (0, nq_pad - nq)))          # biases stay f32
    b1f = b1.astype(jnp.float32)
    b2f = b2.astype(jnp.float32)

    grid = (b_pad // tb,)

    # Weights/biases: constant block index -> resident across the batch loop.
    resident = lambda arr: pl.BlockSpec(arr.shape, lambda i: (0, 0))

    cbytes = jnp.dtype(cdt).itemsize
    flops = 2 * b_pad * ((state_dim + action_dim) * H + H * H + H * nq_pad)
    bytes_accessed = (
        b_pad * (state_dim + action_dim) * cbytes          # inputs
        + ((state_dim + action_dim) * H + H * H + H * nq_pad) * cbytes  # W
        + (2 * H + nq_pad) * 4                             # biases (f32)
        + b_pad * nq_pad * 4)                              # output (f32)

    out = pl.pallas_call(
        _critic_kernel,
        out_shape=jax.ShapeDtypeStruct((b_pad, nq_pad), jnp.float32),
        grid=grid,
        in_specs=[
            pl.BlockSpec((tb, state_dim), lambda i: (i, 0)),
            pl.BlockSpec((tb, action_dim), lambda i: (i, 0)),
            resident(w1s), resident(w1a), resident(b1f),
            resident(w2c), resident(b2f),
            resident(w3c), resident(b3p),
        ],
        out_specs=pl.BlockSpec((tb, nq_pad), lambda i: (i, 0)),
        compiler_params=pltpu.CompilerParams(
            dimension_semantics=("parallel",)),
        cost_estimate=pl.CostEstimate(
            flops=flops, transcendentals=0, bytes_accessed=bytes_accessed),
    )(s, a, w1s, w1a, b1f, w2c, b2f, w3c, b3p)

    return out[:B, :nq]


def init_critic_params(key, state_dim, action_dim, num_quantiles):
    """Deterministic init mimicking PyTorch nn.Linear default (uniform
    +-1/sqrt(fan_in)). Weights stored as [in, out], biases as [1, out]."""
    dims = [(state_dim + action_dim, 128), (128, 128), (128, num_quantiles)]
    params = []
    for (fan_in, fan_out) in dims:
        key, kw, kb = jax.random.split(key, 3)
        bound = 1.0 / jnp.sqrt(jnp.float32(fan_in))
        w = jax.random.uniform(kw, (fan_in, fan_out), jnp.float32,
                               minval=-bound, maxval=bound)
        b = jax.random.uniform(kb, (1, fan_out), jnp.float32,
                               minval=-bound, maxval=bound)
        params.extend([w, b])
    return tuple(params)


if __name__ == "__main__":
    key = jax.random.PRNGKey(0)

    batch = 8
    state_dim = 24
    action_dim = 8
    num_quantiles = 32

    key, ks, ka, kp = jax.random.split(key, 4)
    state = jax.random.normal(ks, (batch, state_dim), jnp.float32)
    action = jax.random.normal(ka, (batch, action_dim), jnp.float32)
    params = init_critic_params(kp, state_dim, action_dim, num_quantiles)

    # Reference in plain JAX (same math as the PyTorch module).
    w1, b1, w2, b2, w3, b3 = params
    x = jnp.concatenate([state, action], axis=-1)
    h = jnp.maximum(x @ w1 + b1, 0.0)
    h = jnp.maximum(h @ w2 + b2, 0.0)
    ref = h @ w3 + b3

    # f32 compute path: exact match to reference.
    out_f32 = critic_forward(state, action, params,
                             compute_dtype=jnp.float32)
    out_f32 = jax.block_until_ready(out_f32)
    assert out_f32.shape == (batch, num_quantiles)
    assert jnp.allclose(out_f32, ref, atol=1e-5, rtol=1e-5)

    # bf16-MXU path (v6e/v7x perf mode): f32 accumulation, looser tolerance.
    out_bf16 = critic_forward(state, action, params,
                              compute_dtype=jnp.bfloat16)
    out_bf16 = jax.block_until_ready(out_bf16)
    assert out_bf16.shape == (batch, num_quantiles)
    assert jnp.allclose(out_bf16, ref, atol=5e-2, rtol=5e-2)

    print("KERNEL_OK")
</pallas_src>

<mosaic_0001>
module attributes {stable_mosaic.version = 11 : i64} {
  func.func @_critic_kernel(%arg0: i32, %arg1: memref<8x24xf32, #tpu.memory_space<vmem>>, %arg2: memref<8x8xf32, #tpu.memory_space<vmem>>, %arg3: memref<24x128xf32, #tpu.memory_space<vmem>>, %arg4: memref<8x128xf32, #tpu.memory_space<vmem>>, %arg5: memref<1x128xf32, #tpu.memory_space<vmem>>, %arg6: memref<128x128xf32, #tpu.memory_space<vmem>>, %arg7: memref<1x128xf32, #tpu.memory_space<vmem>>, %arg8: memref<128x128xf32, #tpu.memory_space<vmem>>, %arg9: memref<1x128xf32, #tpu.memory_space<vmem>>, %arg10: memref<8x128xf32, #tpu.memory_space<vmem>>) attributes {dimension_semantics = [#tpu.dimension_semantics<parallel>], iteration_bounds = array<i64: 1>, scalar_prefetch = 0 : i64, scratch_operands = 0 : i64, tpu.core_type = #tpu.core_type<tc>, window_params = [{transform_indices = @transform_0, window_bounds = array<i64: 8, 24>}, {transform_indices = @transform_1, window_bounds = array<i64: 8, 8>}, {pipeline_mode = #tpu.pipeline_mode<synchronous>, transform_indices = @transform_2, window_bounds = array<i64: 24, 128>}, {pipeline_mode = #tpu.pipeline_mode<synchronous>, transform_indices = @transform_3, window_bounds = array<i64: 8, 128>}, {pipeline_mode = #tpu.pipeline_mode<synchronous>, transform_indices = @transform_4, window_bounds = array<i64: 1, 128>}, {pipeline_mode = #tpu.pipeline_mode<synchronous>, transform_indices = @transform_5, window_bounds = array<i64: 128, 128>}, {pipeline_mode = #tpu.pipeline_mode<synchronous>, transform_indices = @transform_6, window_bounds = array<i64: 1, 128>}, {pipeline_mode = #tpu.pipeline_mode<synchronous>, transform_indices = @transform_7, window_bounds = array<i64: 128, 128>}, {pipeline_mode = #tpu.pipeline_mode<synchronous>, transform_indices = @transform_8, window_bounds = array<i64: 1, 128>}, {transform_indices = @transform_9, window_bounds = array<i64: 8, 128>}]} {
    %c0 = arith.constant 0 : index
    %c0_0 = arith.constant 0 : index
    %0 = vector.load %arg1[%c0, %c0_0] : memref<8x24xf32, #tpu.memory_space<vmem>>, vector<8x24xf32>
    %c0_1 = arith.constant 0 : index
    %c0_2 = arith.constant 0 : index
    %1 = vector.load %arg3[%c0_1, %c0_2] : memref<24x128xf32, #tpu.memory_space<vmem>>, vector<24x128xf32>
    %cst = arith.constant dense<0.000000e+00> : vector<8x128xf32>
    %2 = tpu.matmul %0, %1, %cst {dimension_numbers = #tpu.dot_dimension_numbers<[1], [0], [0], [1], [0, 0, 1, 1], [], []>} : vector<8x24xf32>, vector<24x128xf32>, vector<8x128xf32> -> vector<8x128xf32>
    %c0_3 = arith.constant 0 : index
    %c0_4 = arith.constant 0 : index
    %3 = vector.load %arg2[%c0_3, %c0_4] : memref<8x8xf32, #tpu.memory_space<vmem>>, vector<8x8xf32>
    %c0_5 = arith.constant 0 : index
    %c0_6 = arith.constant 0 : index
    %4 = vector.load %arg4[%c0_5, %c0_6] : memref<8x128xf32, #tpu.memory_space<vmem>>, vector<8x128xf32>
    %cst_7 = arith.constant dense<0.000000e+00> : vector<8x128xf32>
    %5 = tpu.matmul %3, %4, %cst_7 {dimension_numbers = #tpu.dot_dimension_numbers<[1], [0], [0], [1], [0, 0, 1, 1], [], []>} : vector<8x8xf32>, vector<8x128xf32>, vector<8x128xf32> -> vector<8x128xf32>
    %6 = arith.addf %2, %5 : vector<8x128xf32>
    %c0_8 = arith.constant 0 : index
    %c0_9 = arith.constant 0 : index
    %7 = vector.load %arg5[%c0_8, %c0_9] : memref<1x128xf32, #tpu.memory_space<vmem>>, vector<1x128xf32>
    %8 = vector.broadcast %7 : vector<1x128xf32> to vector<8x128xf32>
    %9 = arith.addf %6, %8 : vector<8x128xf32>
    %cst_10 = arith.constant 0.000000e+00 : f32
    %10 = vector.broadcast %cst_10 : f32 to vector<8x128xf32>
    %11 = arith.maximumf %9, %10 : vector<8x128xf32>
    %c0_11 = arith.constant 0 : index
    %c0_12 = arith.constant 0 : index
    %12 = vector.load %arg6[%c0_11, %c0_12] : memref<128x128xf32, #tpu.memory_space<vmem>>, vector<128x128xf32>
    %cst_13 = arith.constant dense<0.000000e+00> : vector<8x128xf32>
    %13 = tpu.matmul %11, %12, %cst_13 {dimension_numbers = #tpu.dot_dimension_numbers<[1], [0], [0], [1], [0, 0, 1, 1], [], []>} : vector<8x128xf32>, vector<128x128xf32>, vector<8x128xf32> -> vector<8x128xf32>
    %c0_14 = arith.constant 0 : index
    %c0_15 = arith.constant 0 : index
    %14 = vector.load %arg7[%c0_14, %c0_15] : memref<1x128xf32, #tpu.memory_space<vmem>>, vector<1x128xf32>
    %15 = vector.broadcast %14 : vector<1x128xf32> to vector<8x128xf32>
    %16 = arith.addf %13, %15 : vector<8x128xf32>
    %cst_16 = arith.constant 0.000000e+00 : f32
    %17 = vector.broadcast %cst_16 : f32 to vector<8x128xf32>
    %18 = arith.maximumf %16, %17 : vector<8x128xf32>
    %c0_17 = arith.constant 0 : index
    %c0_18 = arith.constant 0 : index
    %19 = vector.load %arg8[%c0_17, %c0_18] : memref<128x128xf32, #tpu.memory_space<vmem>>, vector<128x128xf32>
    %cst_19 = arith.constant dense<0.000000e+00> : vector<8x128xf32>
    %20 = tpu.matmul %18, %19, %cst_19 {dimension_numbers = #tpu.dot_dimension_numbers<[1], [0], [0], [1], [0, 0, 1, 1], [], []>} : vector<8x128xf32>, vector<128x128xf32>, vector<8x128xf32> -> vector<8x128xf32>
    %c0_20 = arith.constant 0 : index
    %c0_21 = arith.constant 0 : index
    %21 = vector.load %arg9[%c0_20, %c0_21] : memref<1x128xf32, #tpu.memory_space<vmem>>, vector<1x128xf32>
    %22 = vector.broadcast %21 : vector<1x128xf32> to vector<8x128xf32>
    %23 = arith.addf %20, %22 : vector<8x128xf32>
    %c0_22 = arith.constant 0 : index
    %c0_23 = arith.constant 0 : index
    %24 = vector.load %arg10[%c0_22, %c0_23] : memref<8x128xf32, #tpu.memory_space<vmem>>, vector<8x128xf32>
    tpu.vector_store %arg10[%c0_22, %c0_23], %23 {strides = array<i32>} : memref<8x128xf32, #tpu.memory_space<vmem>>, vector<8x128xf32>,
    return
  }
  func.func @transform_0(%arg0: i32) -> (i32, i32) {
    %c0_i32 = arith.constant 0 : i32
    %c0_i32_0 = arith.constant 0 : i32
    return %arg0, %c0_i32 : i32, i32
  }
  func.func @transform_1(%arg0: i32) -> (i32, i32) {
    %c0_i32 = arith.constant 0 : i32
    %c0_i32_0 = arith.constant 0 : i32
    return %arg0, %c0_i32 : i32, i32
  }
  func.func @transform_2(%arg0: i32) -> (i32, i32) {
    %c0_i32 = arith.constant 0 : i32
    %c0_i32_0 = arith.constant 0 : i32
    %c0_i32_1 = arith.constant 0 : i32
    return %c0_i32, %c0_i32_0 : i32, i32
  }
  func.func @transform_3(%arg0: i32) -> (i32, i32) {
    %c0_i32 = arith.constant 0 : i32
    %c0_i32_0 = arith.constant 0 : i32
    %c0_i32_1 = arith.constant 0 : i32
    return %c0_i32, %c0_i32_0 : i32, i32
  }
  func.func @transform_4(%arg0: i32) -> (i32, i32) {
    %c0_i32 = arith.constant 0 : i32
    %c0_i32_0 = arith.constant 0 : i32
    %c0_i32_1 = arith.constant 0 : i32
    return %c0_i32, %c0_i32_0 : i32, i32
  }
  func.func @transform_5(%arg0: i32) -> (i32, i32) {
    %c0_i32 = arith.constant 0 : i32
    %c0_i32_0 = arith.constant 0 : i32
    %c0_i32_1 = arith.constant 0 : i32
    return %c0_i32, %c0_i32_0 : i32, i32
  }
  func.func @transform_6(%arg0: i32) -> (i32, i32) {
    %c0_i32 = arith.constant 0 : i32
    %c0_i32_0 = arith.constant 0 : i32
    %c0_i32_1 = arith.constant 0 : i32
    return %c0_i32, %c0_i32_0 : i32, i32
  }
  func.func @transform_7(%arg0: i32) -> (i32, i32) {
    %c0_i32 = arith.constant 0 : i32
    %c0_i32_0 = arith.constant 0 : i32
    %c0_i32_1 = arith.constant 0 : i32
    return %c0_i32, %c0_i32_0 : i32, i32
  }
  func.func @transform_8(%arg0: i32) -> (i32, i32) {
    %c0_i32 = arith.constant 0 : i32
    %c0_i32_0 = arith.constant 0 : i32
    %c0_i32_1 = arith.constant 0 : i32
    return %c0_i32, %c0_i32_0 : i32, i32
  }
  func.func @transform_9(%arg0: i32) -> (i32, i32) {
    %c0_i32 = arith.constant 0 : i32
    %c0_i32_0 = arith.constant 0 : i32
    return %arg0, %c0_i32 : i32, i32
  }
}

</mosaic_0001>

<llo_original>
// kernel: critic_forward.1
$region0: #{critic_forward.1}
  #allocation0 [shape = 'u32[]', space=smem, size = 0x4, offset = 0x4, fixed_abs, tag = 'smem constant byte address 0x4 - core index']
  #allocation1 [shape = 'u32[72,128]{1,0:T(1,128)}', space=vmem, size = 0x9000, scoped, tag = 'internal scratch']
  %s0 = inlined_call_operand.vmem [shape: f32[8,24], index: 0, kind: input, shape index: {}]
  %s1 = inlined_call_operand.vmem [shape: f32[8,8], index: 1, kind: input, shape index: {}]
  %s2 = inlined_call_operand.vmem [shape: f32[24,128], index: 2, kind: input, shape index: {}]
  %s3 = inlined_call_operand.vmem [shape: f32[8,128], index: 3, kind: input, shape index: {}]
  %s4 = inlined_call_operand.vmem [shape: f32[1,128], index: 4, kind: input, shape index: {}]
  %s5 = inlined_call_operand.vmem [shape: f32[128,128], index: 5, kind: input, shape index: {}]
  %s6 = inlined_call_operand.vmem [shape: f32[1,128], index: 6, kind: input, shape index: {}]
  %s7 = inlined_call_operand.vmem [shape: f32[128,128], index: 7, kind: input, shape index: {}]
  %s8 = inlined_call_operand.vmem [shape: f32[1,128], index: 8, kind: input, shape index: {}]
  %s9 = inlined_call_operand.hbm [shape: f32[8,128], index: 9, kind: output, shape index: {}]
  %s10 = sld [smem:[#allocation0]]
  $region46: #{critic_forward.1} parent=0
    _
  %s12 = ssub.s32 1, %s10
  %s13 = scalar_select 0, %s12, %s10
  $region1: #{critic_forward.1} parent=0
    #allocation2 [shape = 'u8[4096]{0}', space=vmem, size = 0x1000, scoped, tag = 'output window, operand 0, single buffered']
    #allocation3 [shape = 's32[1]{0}', space=sflag, size = 0x4, scoped, tag = 'scoped memory for critic_forward.1']
    %14 = vsyncpa [#allocation3], 0
    // Predicated region
    $region2: #{critic_forward.1} parent=1 // pred_check
      _
    $region3: #{critic_forward.1} parent=1 // pred_check_branch
      %16 = sbr.rel (0) target = $region5
    $region4: #{critic_forward.1} parent=1 // pred_region
      _
    $region5: #{critic_forward.1} parent=1 // pred_fallthru
      _
    // Predicated region
    $region6: #{critic_forward.1} parent=1 // pred_check
      _
    $region7: #{critic_forward.1} parent=1 // pred_check_branch
      %18 = sbr.rel (0) target = $region9
    $region8: #{critic_forward.1} parent=1 // pred_region
      _
    $region9: #{critic_forward.1} parent=1 // pred_fallthru
      _
    // Predicated region
    $region10: #{critic_forward.1} parent=1 // pred_check
      _
    $region11: #{critic_forward.1} parent=1 // pred_check_branch
      %20 = sbr.rel (0) target = $region13
    $region12: #{critic_forward.1} parent=1 // pred_region
      _
    $region13: #{critic_forward.1} parent=1 // pred_fallthru
      _
    // Predicated region
    $region14: #{critic_forward.1} parent=1 // pred_check
      _
    $region15: #{critic_forward.1} parent=1 // pred_check_branch
      %22 = sbr.rel (0) target = $region17
    $region16: #{critic_forward.1} parent=1 // pred_region
      _
    $region17: #{critic_forward.1} parent=1 // pred_fallthru
      _
    // Predicated region
    $region18: #{critic_forward.1} parent=1 // pred_check
      _
    $region19: #{critic_forward.1} parent=1 // pred_check_branch
      %24 = sbr.rel (0) target = $region21
    $region20: #{critic_forward.1} parent=1 // pred_region
      _
    $region21: #{critic_forward.1} parent=1 // pred_fallthru
      _
    // Predicated region
    $region22: #{critic_forward.1} parent=1 // pred_check
      _
    $region23: #{critic_forward.1} parent=1 // pred_check_branch
      %26 = sbr.rel (0) target = $region25
    $region24: #{critic_forward.1} parent=1 // pred_region
      _
    $region25: #{critic_forward.1} parent=1 // pred_fallthru
      _
    // Predicated region
    $region26: #{critic_forward.1} parent=1 // pred_check
      _
    $region27: #{critic_forward.1} parent=1 // pred_check_branch
      %28 = sbr.rel (0) target = $region29
    $region28: #{critic_forward.1} parent=1 // pred_region
      _
    $region29: #{critic_forward.1} parent=1 // pred_fallthru
      _
    // Predicated region
    $region30: #{critic_forward.1} parent=1 // pred_check
      _
    $region31: #{critic_forward.1} parent=1 // pred_check_branch
      %30 = sbr.rel (0) target = $region33
    $region32: #{critic_forward.1} parent=1 // pred_region
      _
    $region33: #{critic_forward.1} parent=1 // pred_fallthru
      _
    // Predicated region
    $region34: #{critic_forward.1} parent=1 // pred_check
      _
    $region35: #{critic_forward.1} parent=1 // pred_check_branch
      %32 = sbr.rel (0) target = $region37
    $region36: #{critic_forward.1} parent=1 // pred_region
      _
    $region37: #{critic_forward.1} parent=1 // pred_fallthru
      _
    %v33 = vld [vmem:[%s0] sm:$0xff]
    %v34 = vld [vmem:[%s2] sm:$0xff]
    %v35 = vld [vmem:[%s2 + $0x8] sm:$0xff]
    %v36 = vld [vmem:[%s2 + $0x10] sm:$0xff]
    %v37 = vld [vmem:[%s1] sm:$0xff]
    %v38 = vld [vmem:[%s3] sm:$0xff]
    %vm39 = vcmask 64512
    %v41 = vsel %vm39, %v37, 0
    %43 = vmatpush.msra.mxu0 0.0
    %44 = vmatpush.msra.mxu0 0.0
    %45 = vmatpush.msra.mxu0 0.0
    %46 = vmatpush.msra.mxu0 0.0
    %47 = vmatpush.msra.mxu0 0.0
    %48 = vmatpush.msra.mxu0 0.0
    %49 = vmatpush.msra.mxu0 0.0
    %50 = vmatpush.msra.mxu0 0.0
    %51 = vmatpush.msra.mxu0 0.0
    %52 = vmatpush.msra.mxu0 0.0
    %53 = vmatpush.msra.mxu0 0.0
    %54 = vmatpush.msra.mxu0 0.0
    %55 = vmatpush.msra.mxu0 0.0
    %56 = vmatpush.msra.mxu0 0.0
    %57 = vmatpush.msra.mxu0 0.0
    %58 = vmatpush.msra.mxu0 %v38
    %59 = vmatmul.f32.gmra.mxu0 %v41
    %v60 = vpop.f32.mrf.mxu0
    %v61 = vadd.f32 0.0, %v60
    %62 = vdwg.mxu0
    %vm63 = vcmask 195584
    %v65 = vsel %vm63, %v33, 0
    %67 = vmatpush.msra.mxu0 0.0
    %68 = vmatpush.msra.mxu0 0.0
    %69 = vmatpush.msra.mxu0 0.0
    %70 = vmatpush.msra.mxu0 0.0
    %71 = vmatpush.msra.mxu0 0.0
    %72 = vmatpush.msra.mxu0 0.0
    %73 = vmatpush.msra.mxu0 0.0
    %74 = vmatpush.msra.mxu0 0.0
    %75 = vmatpush.msra.mxu0 0.0
    %76 = vmatpush.msra.mxu0 0.0
    %77 = vmatpush.msra.mxu0 0.0
    %78 = vmatpush.msra.mxu0 0.0
    %79 = vmatpush.msra.mxu0 0.0
    %80 = vmatpush.msra.mxu0 %v36
    %81 = vmatpush.msra.mxu0 %v35
    %82 = vmatpush.msra.mxu0 %v34
    %83 = vmatmul.f32.gmra.mxu0 %v65
    %v84 = vpop.f32.mrf.mxu0
    %v85 = vadd.f32 %v61, %v84
    %86 = vdwg.mxu0
    %v87 = vld [vmem:[%s4] sm:$0x1]
    %v89 = vperm.slane %v87, 0
    %v91 = vadd.f32 %v85, %v89
    %v92 = vmax.f32 %v91, 0.0
    %v93 = vld [vmem:[%s5] sm:$0xff]
    %v94 = vld [vmem:[%s5 + $0x8] sm:$0xff]
    %v95 = vld [vmem:[%s5 + $0x10] sm:$0xff]
    %v96 = vld [vmem:[%s5 + $0x18] sm:$0xff]
    %v97 = vld [vmem:[%s5 + $0x20] sm:$0xff]
    %v98 = vld [vmem:[%s5 + $0x28] sm:$0xff]
    %v99 = vld [vmem:[%s5 + $0x30] sm:$0xff]
    %v100 = vld [vmem:[%s5 + $0x38] sm:$0xff]
    %v101 = vld [vmem:[%s5 + $0x40] sm:$0xff]
    %v102 = vld [vmem:[%s5 + $0x48] sm:$0xff]
    %v103 = vld [vmem:[%s5 + $0x50] sm:$0xff]
    %v104 = vld [vmem:[%s5 + $0x58] sm:$0xff]
    %v105 = vld [vmem:[%s5 + $0x60] sm:$0xff]
    %v106 = vld [vmem:[%s5 + $0x68] sm:$0xff]
    %v107 = vld [vmem:[%s5 + $0x70] sm:$0xff]
    %v108 = vld [vmem:[%s5 + $0x78] sm:$0xff]
    %v109 = vld [vmem:[%s6] sm:$0x1]
    %v111 = vperm.slane %v109, 0
    %113 = vmatpush.msra.mxu0 %v108
    %114 = vmatpush.msra.mxu0 %v107
    %115 = vmatpush.msra.mxu0 %v106
    %116 = vmatpush.msra.mxu0 %v105
    %117 = vmatpush.msra.mxu0 %v104
    %118 = vmatpush.msra.mxu0 %v103
    %119 = vmatpush.msra.mxu0 %v102
    %120 = vmatpush.msra.mxu0 %v101
    %121 = vmatpush.msra.mxu0 %v100
    %122 = vmatpush.msra.mxu0 %v99
    %123 = vmatpush.msra.mxu0 %v98
    %124 = vmatpush.msra.mxu0 %v97
    %125 = vmatpush.msra.mxu0 %v96
    %126 = vmatpush.msra.mxu0 %v95
    %127 = vmatpush.msra.mxu0 %v94
    %128 = vmatpush.msra.mxu0 %v93
    %129 = vmatmul.f32.gmra.mxu0 %v92
    %v130 = vpop.f32.mrf.mxu0
    %v131 = vadd.f32 %v111, %v130
    %132 = vdwg.mxu0
    %v133 = vmax.f32 %v131, 0.0
    %v134 = vld [vmem:[%s7] sm:$0xff]
    %v135 = vld [vmem:[%s7 + $0x8] sm:$0xff]
    %v136 = vld [vmem:[%s7 + $0x10] sm:$0xff]
    %v137 = vld [vmem:[%s7 + $0x18] sm:$0xff]
    %v138 = vld [vmem:[%s7 + $0x20] sm:$0xff]
    %v139 = vld [vmem:[%s7 + $0x28] sm:$0xff]
    %v140 = vld [vmem:[%s7 + $0x30] sm:$0xff]
    %v141 = vld [vmem:[%s7 + $0x38] sm:$0xff]
    %v142 = vld [vmem:[%s7 + $0x40] sm:$0xff]
    %v143 = vld [vmem:[%s7 + $0x48] sm:$0xff]
    %v144 = vld [vmem:[%s7 + $0x50] sm:$0xff]
    %v145 = vld [vmem:[%s7 + $0x58] sm:$0xff]
    %v146 = vld [vmem:[%s7 + $0x60] sm:$0xff]
    %v147 = vld [vmem:[%s7 + $0x68] sm:$0xff]
    %v148 = vld [vmem:[%s7 + $0x70] sm:$0xff]
    %v149 = vld [vmem:[%s7 + $0x78] sm:$0xff]
    %v150 = vld [vmem:[%s8] sm:$0x1]
    %v152 = vperm.slane %v150, 0
    %154 = vmatpush.msra.mxu0 %v149
    %155 = vmatpush.msra.mxu0 %v148
    %156 = vmatpush.msra.mxu0 %v147
    %157 = vmatpush.msra.mxu0 %v146
    %158 = vmatpush.msra.mxu0 %v145
    %159 = vmatpush.msra.mxu0 %v144
    %160 = vmatpush.msra.mxu0 %v143
    %161 = vmatpush.msra.mxu0 %v142
    %162 = vmatpush.msra.mxu0 %v141
    %163 = vmatpush.msra.mxu0 %v140
    %164 = vmatpush.msra.mxu0 %v139
    %165 = vmatpush.msra.mxu0 %v138
    %166 = vmatpush.msra.mxu0 %v137
    %167 = vmatpush.msra.mxu0 %v136
    %168 = vmatpush.msra.mxu0 %v135
    %169 = vmatpush.msra.mxu0 %v134
    %170 = vmatmul.f32.gmra.mxu0 %v133
    %v171 = vpop.f32.mrf.mxu0
    %v172 = vadd.f32 %v152, %v171
    %173 = vdwg.mxu0
    %174 = vst [vmem:[#allocation2] sm:$0xff] %v172
    // Predicated region
    $region38: #{critic_forward.1} parent=1 // pred_check
      _
    $region39: #{critic_forward.1} parent=1 // pred_check_branch
      %176 = sbr.rel (0) target = $region41
    $region40: #{critic_forward.1} parent=1 // pred_region
      %178 = vsyncadd [#allocation3], 0
      %s180 = sshll.u32 [#allocation2], 4
      %s181 = int_to_ptr.vmem [resolvable:$true] %s180
      %s182 = sshll.u32 %s9, 4
      %s183 = int_to_ptr.hbm [resolvable:$true] %s182
      %185 = dma.vmem_to_hbm [thread:$0]  %s181, 128, %s183, [#allocation3]
    $region41: #{critic_forward.1} parent=1 // pred_fallthru
      _
    // Predicated region
    $region42: #{critic_forward.1} parent=1 // pred_check
      _
    $region43: #{critic_forward.1} parent=1 // pred_check_branch
      %187 = sbr.rel (0) target = $region45
    $region44: #{critic_forward.1} parent=1 // pred_region
      %189 = dma.done [#allocation3], 128
    $region45: #{critic_forward.1} parent=1 // pred_fallthru
      _
    %190 = vsyncpa [#allocation3], 1

</llo_original>
